<compile_context>
chip_gen: v5e
topology: v5e:2x2
jax: 0.10.0
libtpu: 0.0.40
codegen_flags: <defaults>
</compile_context>

<pallas_src>
import jax
import jax.numpy as jnp
from jax import lax
from jax.experimental import pallas as pl
from jax.experimental.pallas import tpu as pltpu


def _round_up(a, b):
    return (a + b - 1) // b * b


def _make_quantize_kernel(n_valid, tile_rows):
    def kernel(x_ref, embed_ref, esq_ref, q_ref, idx_ref, sqerr_ref):
        # x_ref:     (TM, D)             tile of flattened (zero-padded) input rows
        # embed_ref: (D, K)              full codebook
        # esq_ref:   (1, K)              precomputed ||e_j||^2 (hoisted out of kernel)
        # q_ref:     (TM, D)             quantized output rows
        # idx_ref:   (1, TM//128, 128)   lane-dense argmin code indices (int32)
        # sqerr_ref: (1, 8, 128)         per-tile scalar sum of squared error (broadcast)
        x = x_ref[...].astype(jnp.float32)          # (TM, D)
        e = embed_ref[...].astype(jnp.float32)      # (D, K)
        e_sq = esq_ref[...].astype(jnp.float32)     # (1, K)
        tm, d = x.shape
        k = e.shape[1]

        # argmin_j ||x - e_j||^2  ==  argmax_j (2 x.e_j - ||e_j||^2)
        # (||x||^2 is constant per row and dropped from the score.)
        xe = jnp.dot(x, e, preferred_element_type=jnp.float32)    # (TM, K)  MXU
        score = 2.0 * xe - e_sq
        idx = jnp.argmax(score, axis=1).astype(jnp.int32)         # (TM,)

        # Gather codebook vectors via one-hot @ embed^T (MXU-friendly, no gather).
        onehot = (lax.broadcasted_iota(jnp.int32, (tm, k), 1) == idx[:, None]
                  ).astype(jnp.float32)                           # (TM, K)
        q = lax.dot_general(
            onehot, e,
            dimension_numbers=(((1,), (1,)), ((), ())),           # contract K with K
            preferred_element_type=jnp.float32)                   # (TM, D)

        # Sum of squared error, masking rows that are only padding.
        row0 = pl.program_id(0) * tile_rows
        gidx = row0 + lax.broadcasted_iota(jnp.int32, (tm, 1), 0)
        valid = (gidx < n_valid).astype(jnp.float32)              # (TM, 1)
        d_err = q - x
        tile_err = jnp.sum(d_err * d_err * valid)                 # scalar
        sqerr_ref[...] = jnp.full(sqerr_ref.shape, tile_err, dtype=jnp.float32)

        # Forward value of the straight-through estimator is just q.
        # TODO(synk): gradients (STE w.r.t. x) would need a jax.custom_vjp wrapper.
        q_ref[...] = q.astype(q_ref.dtype)
        idx_ref[...] = idx.reshape(idx_ref.shape)

    return kernel


def quantize_forward(x, embed, *, tile_rows=1024):
    """Equivalent of Quantize.forward(x) in eval mode.

    Returns (quantize, diff, embed_ind) matching the PyTorch default return order.
    embed_ind is int32 (PyTorch returns int64).
    """
    orig_shape = x.shape
    dim, n_embed = embed.shape
    assert orig_shape[-1] == dim
    flat = x.reshape(-1, dim)
    n = flat.shape[0]

    # Lane-aligned row tile (multiple of 128); shrink to a single tile for small
    # inputs, pad rows otherwise.  Either num_tiles == 1 or tr == tile_rows,
    # which keeps every BlockSpec (8,128)-compliant.
    tr = max(128, min(_round_up(tile_rows, 128), _round_up(n, 128)))
    n_pad = _round_up(n, tr)
    num_tiles = n_pad // tr
    if n_pad != n:
        flat = jnp.pad(flat, ((0, n_pad - n), (0, 0)))

    # Hoisted: ||e_j||^2 computed once outside the kernel.
    e_sq = jnp.sum(embed.astype(jnp.float32) ** 2, axis=0, keepdims=True)  # (1, K)

    kernel = _make_quantize_kernel(n, tr)

    q, idx, sqerr = pl.pallas_call(
        kernel,
        out_shape=(
            jax.ShapeDtypeStruct((n_pad, dim), x.dtype),
            jax.ShapeDtypeStruct((num_tiles, tr // 128, 128), jnp.int32),
            jax.ShapeDtypeStruct((num_tiles, 8, 128), jnp.float32),
        ),
        grid_spec=pltpu.PrefetchScalarGridSpec(
            num_scalar_prefetch=0,
            grid=(num_tiles,),
            in_specs=[
                pl.BlockSpec((tr, dim), lambda i: (i, 0)),
                pl.BlockSpec((dim, n_embed), lambda i: (0, 0)),
                pl.BlockSpec((1, n_embed), lambda i: (0, 0)),
            ],
            out_specs=[
                pl.BlockSpec((tr, dim), lambda i: (i, 0)),
                pl.BlockSpec((1, tr // 128, 128), lambda i: (i, 0, 0)),
                pl.BlockSpec((1, 8, 128), lambda i: (i, 0, 0)),
            ],
        ),
        compiler_params=pltpu.CompilerParams(
            dimension_semantics=("parallel",)),
    )(flat, embed, e_sq)

    quantize = q[:n].reshape(orig_shape)
    embed_ind = idx.reshape(n_pad)[:n].reshape(orig_shape[:-1])
    diff = jnp.sum(sqerr[:, 0, 0]) / jnp.float32(n * dim)   # mean over all elements
    return quantize, diff, embed_ind


def _quantize_ref(x, embed):
    """Pure-JAX reference matching the PyTorch forward exactly."""
    dim = embed.shape[0]
    flat = x.reshape(-1, dim)
    dist = (jnp.sum(flat ** 2, axis=1, keepdims=True)
            - 2.0 * flat @ embed
            + jnp.sum(embed ** 2, axis=0, keepdims=True))
    idx = jnp.argmax(-dist, axis=1)
    q = embed.T[idx]
    diff = jnp.mean((q - flat) ** 2)
    q_st = flat + (q - flat)
    return q_st.reshape(x.shape), diff, idx.reshape(x.shape[:-1])


if __name__ == "__main__":
    key = jax.random.PRNGKey(0)
    k_embed, k_x = jax.random.split(key)

    dim, n_embed = 32, 128          # Quantize(dim=32, n_embed=128)
    B, T = 2, 8                     # input (B, T, dim) -> 16 flattened rows

    embed = jax.random.normal(k_embed, (dim, n_embed), dtype=jnp.float32)
    x = jax.random.normal(k_x, (B, T, dim), dtype=jnp.float32)

    quantize, diff, embed_ind = quantize_forward(x, embed)
    jax.block_until_ready((quantize, diff, embed_ind))

    q_ref, diff_ref, idx_ref = _quantize_ref(x, embed)
    assert jnp.array_equal(embed_ind, idx_ref.astype(jnp.int32)), "index mismatch"
    assert jnp.allclose(quantize, q_ref, atol=1e-5, rtol=1e-5), "quantize mismatch"
    assert jnp.allclose(diff, diff_ref, atol=1e-5, rtol=1e-5), "diff mismatch"

    # Also exercise a larger, non-multiple row count to cover the padding path
    # and a multi-step grid (2560 rows -> 3 tiles of 1024 with masking).
    x_big = jax.random.normal(jax.random.PRNGKey(1), (5, 512, dim), dtype=jnp.float32)
    q_b, d_b, i_b = quantize_forward(x_big, embed)
    jax.block_until_ready((q_b, d_b, i_b))
    qr, dr, ir = _quantize_ref(x_big, embed)
    assert jnp.array_equal(i_b, ir.astype(jnp.int32)), "index mismatch (big)"
    assert jnp.allclose(q_b, qr, atol=1e-5, rtol=1e-5), "quantize mismatch (big)"
    assert jnp.allclose(d_b, dr, atol=1e-5, rtol=1e-5), "diff mismatch (big)"

    # TODO(synk): training-mode EMA codebook updates (cluster_size / embed_avg
    # buffers, optional all_reduce) are stateful side-effects not reproduced here.
    print("KERNEL_OK")
</pallas_src>

<mosaic_0001>
module attributes {stable_mosaic.version = 11 : i64} {
  func.func @kernel(%arg0: i32, %arg1: memref<128x32xf32, #tpu.memory_space<vmem>>, %arg2: memref<32x128xf32, #tpu.memory_space<vmem>>, %arg3: memref<1x128xf32, #tpu.memory_space<vmem>>, %arg4: memref<128x32xf32, #tpu.memory_space<vmem>>, %arg5: memref<1x1x128xi32, #tpu.memory_space<vmem>>, %arg6: memref<1x8x128xf32, #tpu.memory_space<vmem>>) attributes {dimension_semantics = [#tpu.dimension_semantics<parallel>], iteration_bounds = array<i64: 1>, scalar_prefetch = 0 : i64, scratch_operands = 0 : i64, tpu.core_type = #tpu.core_type<tc>, window_params = [{transform_indices = @transform_0, window_bounds = array<i64: 128, 32>}, {pipeline_mode = #tpu.pipeline_mode<synchronous>, transform_indices = @transform_1, window_bounds = array<i64: 32, 128>}, {pipeline_mode = #tpu.pipeline_mode<synchronous>, transform_indices = @transform_2, window_bounds = array<i64: 1, 128>}, {transform_indices = @transform_3, window_bounds = array<i64: 128, 32>}, {transform_indices = @transform_4, window_bounds = array<i64: 1, 1, 128>}, {transform_indices = @transform_5, window_bounds = array<i64: 1, 8, 128>}]} {
    %c0 = arith.constant 0 : index
    %c0_0 = arith.constant 0 : index
    %0 = vector.load %arg1[%c0, %c0_0] : memref<128x32xf32, #tpu.memory_space<vmem>>, vector<128x32xf32>
    %c0_1 = arith.constant 0 : index
    %c0_2 = arith.constant 0 : index
    %1 = vector.load %arg2[%c0_1, %c0_2] : memref<32x128xf32, #tpu.memory_space<vmem>>, vector<32x128xf32>
    %c0_3 = arith.constant 0 : index
    %c0_4 = arith.constant 0 : index
    %2 = vector.load %arg3[%c0_3, %c0_4] : memref<1x128xf32, #tpu.memory_space<vmem>>, vector<1x128xf32>
    %cst = arith.constant dense<0.000000e+00> : vector<128x128xf32>
    %3 = tpu.matmul %0, %1, %cst {dimension_numbers = #tpu.dot_dimension_numbers<[1], [0], [0], [1], [0, 0, 1, 1], [], []>} : vector<128x32xf32>, vector<32x128xf32>, vector<128x128xf32> -> vector<128x128xf32>
    %cst_5 = arith.constant 2.000000e+00 : f32
    %4 = vector.broadcast %cst_5 : f32 to vector<128x128xf32>
    %5 = arith.mulf %4, %3 : vector<128x128xf32>
    %6 = vector.broadcast %2 : vector<1x128xf32> to vector<128x128xf32>
    %7 = arith.subf %5, %6 : vector<128x128xf32>
    %8 = tpu.reduce_index %7 {axis = 1 : i32, kind = #tpu.reduction_kind<arg_max>} : vector<128x128xf32> -> vector<128xi32>
    %9 = tpu.iota {dimensions = array<i32: 1>} : vector<128x128xi32>
    %10 = vector.shape_cast %8 : vector<128xi32> to vector<128x1xi32>
    %11 = vector.broadcast %10 : vector<128x1xi32> to vector<128x128xi32>
    %12 = arith.cmpi eq, %9, %11 : vector<128x128xi32>
    %13 = arith.extui %12 : vector<128x128xi1> to vector<128x128xi32>
    %14 = arith.sitofp %13 : vector<128x128xi32> to vector<128x128xf32>
    %cst_6 = arith.constant dense<0.000000e+00> : vector<128x32xf32>
    %15 = tpu.matmul %14, %1, %cst_6 {dimension_numbers = #tpu.dot_dimension_numbers<[1], [1], [0], [0], [0, 0, 1, 0], [], []>} : vector<128x128xf32>, vector<32x128xf32>, vector<128x32xf32> -> vector<128x32xf32>
    %c128_i32 = arith.constant 128 : i32
    %16 = arith.muli %arg0, %c128_i32 : i32
    %17 = tpu.iota {dimensions = array<i32: 0>} : vector<128x1xi32>
    %18 = vector.broadcast %16 : i32 to vector<128x1xi32>
    %19 = arith.addi %18, %17 : vector<128x1xi32>
    %c16_i32 = arith.constant 16 : i32
    %20 = vector.broadcast %c16_i32 : i32 to vector<128x1xi32>
    %21 = arith.cmpi slt, %19, %20 : vector<128x1xi32>
    %22 = arith.extui %21 : vector<128x1xi1> to vector<128x1xi32>
    %23 = arith.sitofp %22 : vector<128x1xi32> to vector<128x1xf32>
    %24 = arith.subf %15, %0 : vector<128x32xf32>
    %25 = arith.mulf %24, %24 : vector<128x32xf32>
    %26 = vector.broadcast %23 : vector<128x1xf32> to vector<128x32xf32>
    %27 = arith.mulf %25, %26 : vector<128x32xf32>
    %28 = vector.shape_cast %27 : vector<128x32xf32> to vector<1x128x32xf32>
    %cst_7 = arith.constant dense<0.000000e+00> : vector<1xf32>
    %29 = vector.multi_reduction <add>, %28, %cst_7 [1, 2] : vector<1x128x32xf32> to vector<1xf32>
    %30 = vector.shape_cast %29 : vector<1xf32> to vector<1x1x1xf32>
    %31 = vector.extract %30[0, 0, 0] : f32 from vector<1x1x1xf32>
    %32 = vector.broadcast %31 : f32 to vector<1x8x128xf32>
    %c0_8 = arith.constant 0 : index
    %c0_9 = arith.constant 0 : index
    %c0_10 = arith.constant 0 : index
    %33 = vector.load %arg6[%c0_8, %c0_9, %c0_10] : memref<1x8x128xf32, #tpu.memory_space<vmem>>, vector<1x8x128xf32>
    tpu.vector_store %arg6[%c0_8, %c0_9, %c0_10], %32 {strides = array<i32>} : memref<1x8x128xf32, #tpu.memory_space<vmem>>, vector<1x8x128xf32>,
    %c0_11 = arith.constant 0 : index
    %c0_12 = arith.constant 0 : index
    %34 = vector.load %arg4[%c0_11, %c0_12] : memref<128x32xf32, #tpu.memory_space<vmem>>, vector<128x32xf32>
    tpu.vector_store %arg4[%c0_11, %c0_12], %15 {strides = array<i32>} : memref<128x32xf32, #tpu.memory_space<vmem>>, vector<128x32xf32>,
    %35 = vector.shape_cast %8 : vector<128xi32> to vector<1x1x128xi32>
    %c0_13 = arith.constant 0 : index
    %c0_14 = arith.constant 0 : index
    %c0_15 = arith.constant 0 : index
    %36 = vector.load %arg5[%c0_13, %c0_14, %c0_15] : memref<1x1x128xi32, #tpu.memory_space<vmem>>, vector<1x1x128xi32>
    tpu.vector_store %arg5[%c0_13, %c0_14, %c0_15], %35 {strides = array<i32>} : memref<1x1x128xi32, #tpu.memory_space<vmem>>, vector<1x1x128xi32>,
    return
  }
  func.func @transform_0(%arg0: i32) -> (i32, i32) {
    %c0_i32 = arith.constant 0 : i32
    %c0_i32_0 = arith.constant 0 : i32
    return %arg0, %c0_i32 : i32, i32
  }
  func.func @transform_1(%arg0: i32) -> (i32, i32) {
    %c0_i32 = arith.constant 0 : i32
    %c0_i32_0 = arith.constant 0 : i32
    %c0_i32_1 = arith.constant 0 : i32
    return %c0_i32, %c0_i32_0 : i32, i32
  }
  func.func @transform_2(%arg0: i32) -> (i32, i32) {
    %c0_i32 = arith.constant 0 : i32
    %c0_i32_0 = arith.constant 0 : i32
    %c0_i32_1 = arith.constant 0 : i32
    return %c0_i32, %c0_i32_0 : i32, i32
  }
  func.func @transform_3(%arg0: i32) -> (i32, i32) {
    %c0_i32 = arith.constant 0 : i32
    %c0_i32_0 = arith.constant 0 : i32
    return %arg0, %c0_i32 : i32, i32
  }
  func.func @transform_4(%arg0: i32) -> (i32, i32, i32) {
    %c0_i32 = arith.constant 0 : i32
    %c0_i32_0 = arith.constant 0 : i32
    %c0_i32_1 = arith.constant 0 : i32
    return %arg0, %c0_i32, %c0_i32_0 : i32, i32, i32
  }
  func.func @transform_5(%arg0: i32) -> (i32, i32, i32) {
    %c0_i32 = arith.constant 0 : i32
    %c0_i32_0 = arith.constant 0 : i32
    %c0_i32_1 = arith.constant 0 : i32
    return %arg0, %c0_i32, %c0_i32_0 : i32, i32, i32
  }
}

</mosaic_0001>

<llo_original>
// kernel: tpu_custom_call.1
$region0: #{tpu_custom_call.1}
  #allocation0 [shape = 'u32[]', space=smem, size = 0x4, offset = 0x4, fixed_abs, tag = 'smem constant byte address 0x4 - core index']
  #allocation1 [shape = 'u32[72,128]{1,0:T(1,128)}', space=vmem, size = 0x9000, scoped, tag = 'internal scratch']
  %s0 = inlined_call_operand.vmem [shape: f32[128,32], index: 0, kind: input, shape index: {}]
  %s1 = inlined_call_operand.vmem [shape: f32[32,128], index: 1, kind: input, shape index: {}]
  %s2 = inlined_call_operand.vmem [shape: f32[1,128], index: 2, kind: input, shape index: {}]
  %s3 = inlined_call_operand.vmem [shape: f32[128,32], index: 3, kind: output, shape index: {0}]
  %s4 = inlined_call_operand.hbm [shape: s32[1,1,128], index: 4, kind: output, shape index: {1}]
  %s5 = inlined_call_operand.hbm [shape: f32[1,8,128], index: 5, kind: output, shape index: {2}]
  %6 = xla_tuple %s3, %s4, %s5
  %s7 = sld [smem:[#allocation0]]
  $region38: #{tpu_custom_call.1} parent=0
    _
  %s9 = ssub.s32 1, %s7
  %s10 = scalar_select 0, %s9, %s7
  $region1: #{tpu_custom_call.1} parent=0
    #allocation2 [shape = 'u8[512]{0}', space=vmem, size = 0x400, scoped, tag = 'output window, operand 1, single buffered']
    #allocation3 [shape = 's32[1]{0}', space=sflag, size = 0x4, scoped, tag = 'scoped memory for tpu_custom_call.1']
    #allocation4 [shape = 'u8[4096]{0}', space=vmem, size = 0x1000, scoped, tag = 'output window, operand 2, single buffered']
    #allocation5 [shape = 's32[1]{0}', space=sflag, size = 0x4, scoped, tag = 'scoped memory for tpu_custom_call.1']
    %11 = vsyncpa [#allocation3], 0
    %12 = vsyncpa [#allocation5], 0
    // Predicated region
    $region2: #{tpu_custom_call.1} parent=1 // pred_check
      _
    $region3: #{tpu_custom_call.1} parent=1 // pred_check_branch
      %14 = sbr.rel (0) target = $region5
    $region4: #{tpu_custom_call.1} parent=1 // pred_region
      _
    $region5: #{tpu_custom_call.1} parent=1 // pred_fallthru
      _
    // Predicated region
    $region6: #{tpu_custom_call.1} parent=1 // pred_check
      _
    $region7: #{tpu_custom_call.1} parent=1 // pred_check_branch
      %16 = sbr.rel (0) target = $region9
    $region8: #{tpu_custom_call.1} parent=1 // pred_region
      _
    $region9: #{tpu_custom_call.1} parent=1 // pred_fallthru
      _
    // Predicated region
    $region10: #{tpu_custom_call.1} parent=1 // pred_check
      _
    $region11: #{tpu_custom_call.1} parent=1 // pred_check_branch
      %18 = sbr.rel (0) target = $region13
    $region12: #{tpu_custom_call.1} parent=1 // pred_region
      _
    $region13: #{tpu_custom_call.1} parent=1 // pred_fallthru
      _
    %v19 = vld [vmem:[%s0] sm:$0xff]
    %v20 = vld [vmem:[%s0 + $0x8] sm:$0xff]
    %v21 = vld [vmem:[%s0 + $0x10] sm:$0xff]
    %v22 = vld [vmem:[%s0 + $0x18] sm:$0xff]
    %v23 = vld [vmem:[%s0 + $0x20] sm:$0xff]
    %v24 = vld [vmem:[%s0 + $0x28] sm:$0xff]
    %v25 = vld [vmem:[%s0 + $0x30] sm:$0xff]
    %v26 = vld [vmem:[%s0 + $0x38] sm:$0xff]
    %v27 = vld [vmem:[%s0 + $0x40] sm:$0xff]
    %v28 = vld [vmem:[%s0 + $0x48] sm:$0xff]
    %v29 = vld [vmem:[%s0 + $0x50] sm:$0xff]
    %v30 = vld [vmem:[%s0 + $0x58] sm:$0xff]
    %v31 = vld [vmem:[%s0 + $0x60] sm:$0xff]
    %v32 = vld [vmem:[%s0 + $0x68] sm:$0xff]
    %v33 = vld [vmem:[%s0 + $0x70] sm:$0xff]
    %v34 = vld [vmem:[%s0 + $0x78] sm:$0xff]
    %v35 = vld [vmem:[%s1] sm:$0xff]
    %v36 = vld [vmem:[%s1 + $0x8] sm:$0xff]
    %v37 = vld [vmem:[%s1 + $0x10] sm:$0xff]
    %v38 = vld [vmem:[%s1 + $0x18] sm:$0xff]
    %v39 = vld [vmem:[%s2] sm:$0x1]
    %vm40 = vcmask 261120
    %v42 = vsel %vm40, %v19, 0
    %v45 = vsel %vm40, %v20, 0
    %v48 = vsel %vm40, %v21, 0
    %v51 = vsel %vm40, %v22, 0
    %v54 = vsel %vm40, %v23, 0
    %v57 = vsel %vm40, %v24, 0
    %v60 = vsel %vm40, %v25, 0
    %v63 = vsel %vm40, %v26, 0
    %v66 = vsel %vm40, %v27, 0
    %v69 = vsel %vm40, %v28, 0
    %v72 = vsel %vm40, %v29, 0
    %v75 = vsel %vm40, %v30, 0
    %v78 = vsel %vm40, %v31, 0
    %v81 = vsel %vm40, %v32, 0
    %v84 = vsel %vm40, %v33, 0
    %v87 = vsel %vm40, %v34, 0
    %89 = vmatpush.msra.mxu0 0.0
    %90 = vmatpush.msra.mxu0 0.0
    %91 = vmatpush.msra.mxu0 0.0
    %92 = vmatpush.msra.mxu0 0.0
    %93 = vmatpush.msra.mxu0 0.0
    %94 = vmatpush.msra.mxu0 0.0
    %95 = vmatpush.msra.mxu0 0.0
    %96 = vmatpush.msra.mxu0 0.0
    %97 = vmatpush.msra.mxu0 0.0
    %98 = vmatpush.msra.mxu0 0.0
    %99 = vmatpush.msra.mxu0 0.0
    %100 = vmatpush.msra.mxu0 0.0
    %101 = vmatpush.msra.mxu0 %v38
    %102 = vmatpush.msra.mxu0 %v37
    %103 = vmatpush.msra.mxu0 %v36
    %104 = vmatpush.msra.mxu0 %v35
    %105 = vmatmul.f32.gmra.mxu0 %v42
    %v106 = vpop.f32.mrf.mxu0
    %v107 = vadd.f32 0.0, %v106
    %108 = vmatmul.f32.gmra.mxu0 %v45
    %v109 = vpop.f32.mrf.mxu0
    %v110 = vadd.f32 0.0, %v109
    %111 = vmatmul.f32.gmra.mxu0 %v48
    %v112 = vpop.f32.mrf.mxu0
    %v113 = vadd.f32 0.0, %v112
    %114 = vmatmul.f32.gmra.mxu0 %v51
    %v115 = vpop.f32.mrf.mxu0
    %v116 = vadd.f32 0.0, %v115
    %117 = vmatmul.f32.gmra.mxu0 %v54
    %v118 = vpop.f32.mrf.mxu0
    %v119 = vadd.f32 0.0, %v118
    %120 = vmatmul.f32.gmra.mxu0 %v57
    %v121 = vpop.f32.mrf.mxu0
    %v122 = vadd.f32 0.0, %v121
    %123 = vmatmul.f32.gmra.mxu0 %v60
    %v124 = vpop.f32.mrf.mxu0
    %v125 = vadd.f32 0.0, %v124
    %126 = vmatmul.f32.gmra.mxu0 %v63
    %v127 = vpop.f32.mrf.mxu0
    %v128 = vadd.f32 0.0, %v127
    %129 = vmatmul.f32.gmra.mxu0 %v66
    %v130 = vpop.f32.mrf.mxu0
    %v131 = vadd.f32 0.0, %v130
    %132 = vmatmul.f32.gmra.mxu0 %v69
    %v133 = vpop.f32.mrf.mxu0
    %v134 = vadd.f32 0.0, %v133
    %135 = vmatmul.f32.gmra.mxu0 %v72
    %v136 = vpop.f32.mrf.mxu0
    %v137 = vadd.f32 0.0, %v136
    %138 = vmatmul.f32.gmra.mxu0 %v75
    %v139 = vpop.f32.mrf.mxu0
    %v140 = vadd.f32 0.0, %v139
    %141 = vmatmul.f32.gmra.mxu0 %v78
    %v142 = vpop.f32.mrf.mxu0
    %v143 = vadd.f32 0.0, %v142
    %144 = vmatmul.f32.gmra.mxu0 %v81
    %v145 = vpop.f32.mrf.mxu0
    %v146 = vadd.f32 0.0, %v145
    %147 = vmatmul.f32.gmra.mxu0 %v84
    %v148 = vpop.f32.mrf.mxu0
    %v149 = vadd.f32 0.0, %v148
    %150 = vmatmul.f32.gmra.mxu0 %v87
    %v151 = vpop.f32.mrf.mxu0
    %v152 = vadd.f32 0.0, %v151
    %153 = vdwg.mxu0
    %v154 = vmul.f32 %v107, 2.0
    %v155 = vmul.f32 %v110, 2.0
    %v156 = vmul.f32 %v113, 2.0
    %v157 = vmul.f32 %v116, 2.0
    %v158 = vmul.f32 %v119, 2.0
    %v159 = vmul.f32 %v122, 2.0
    %v160 = vmul.f32 %v125, 2.0
    %v161 = vmul.f32 %v128, 2.0
    %v162 = vmul.f32 %v131, 2.0
    %v163 = vmul.f32 %v134, 2.0
    %v164 = vmul.f32 %v137, 2.0
    %v165 = vmul.f32 %v140, 2.0
    %v166 = vmul.f32 %v143, 2.0
    %v167 = vmul.f32 %v146, 2.0
    %v168 = vmul.f32 %v149, 2.0
    %v169 = vmul.f32 %v152, 2.0
    %v171 = vperm.slane %v39, 0
    %v173 = vsub.f32 %v154, %v171
    %v174 = vsub.f32 %v155, %v171
    %v175 = vsub.f32 %v156, %v171
    %v176 = vsub.f32 %v157, %v171
    %v177 = vsub.f32 %v158, %v171
    %v178 = vsub.f32 %v159, %v171
    %v179 = vsub.f32 %v160, %v171
    %v180 = vsub.f32 %v161, %v171
    %v181 = vsub.f32 %v162, %v171
    %v182 = vsub.f32 %v163, %v171
    %v183 = vsub.f32 %v164, %v171
    %v184 = vsub.f32 %v165, %v171
    %v185 = vsub.f32 %v166, %v171
    %v186 = vsub.f32 %v167, %v171
    %v187 = vsub.f32 %v168, %v171
    %v188 = vsub.f32 %v169, %v171
    %189 = vmax.index.xlane.f32.xlu0 %v173
    %v190 = vpop.xlane.xlu0 %189
    %191 = vmax.index.xlane.f32.xlu0 %v174
    %v192 = vpop.xlane.xlu0 %191
    %193 = vmax.index.xlane.f32.xlu0 %v175
    %v194 = vpop.xlane.xlu0 %193
    %195 = vmax.index.xlane.f32.xlu0 %v176
    %v196 = vpop.xlane.xlu0 %195
    %197 = vmax.index.xlane.f32.xlu0 %v177
    %v198 = vpop.xlane.xlu0 %197
    %199 = vmax.index.xlane.f32.xlu0 %v178
    %v200 = vpop.xlane.xlu0 %199
    %201 = vmax.index.xlane.f32.xlu0 %v179
    %v202 = vpop.xlane.xlu0 %201
    %203 = vmax.index.xlane.f32.xlu0 %v180
    %v204 = vpop.xlane.xlu0 %203
    %205 = vmax.index.xlane.f32.xlu0 %v181
    %v206 = vpop.xlane.xlu0 %205
    %207 = vmax.index.xlane.f32.xlu0 %v182
    %v208 = vpop.xlane.xlu0 %207
    %209 = vmax.index.xlane.f32.xlu0 %v183
    %v210 = vpop.xlane.xlu0 %209
    %211 = vmax.index.xlane.f32.xlu0 %v184
    %v212 = vpop.xlane.xlu0 %211
    %213 = vmax.index.xlane.f32.xlu0 %v185
    %v214 = vpop.xlane.xlu0 %213
    %215 = vmax.index.xlane.f32.xlu0 %v186
    %v216 = vpop.xlane.xlu0 %215
    %217 = vmax.index.xlane.f32.xlu0 %v187
    %v218 = vpop.xlane.xlu0 %217
    %219 = vmax.index.xlane.f32.xlu0 %v188
    %v220 = vpop.xlane.xlu0 %219
    %v221 = vlaneseq
    %v222 = vand.u32 %v221, 127
    %vm223 = vcmp.eq.s32.totalorder %v222, %v190
    %vm224 = vcmp.eq.s32.totalorder %v222, %v192
    %vm225 = vcmp.eq.s32.totalorder %v222, %v194
    %vm226 = vcmp.eq.s32.totalorder %v222, %v196
    %vm227 = vcmp.eq.s32.totalorder %v222, %v198
    %vm228 = vcmp.eq.s32.totalorder %v222, %v200
    %vm229 = vcmp.eq.s32.totalorder %v222, %v202
    %vm230 = vcmp.eq.s32.totalorder %v222, %v204
    %vm231 = vcmp.eq.s32.totalorder %v222, %v206
    %vm232 = vcmp.eq.s32.totalorder %v222, %v208
    %vm233 = vcmp.eq.s32.totalorder %v222, %v210
    %vm234 = vcmp.eq.s32.totalorder %v222, %v212
    %vm235 = vcmp.eq.s32.totalorder %v222, %v214
    %vm236 = vcmp.eq.s32.totalorder %v222, %v216
    %vm237 = vcmp.eq.s32.totalorder %v222, %v218
    %vm238 = vcmp.eq.s32.totalorder %v222, %v220
    %v239 = vsel %vm223, 1, 0
    %v240 = vsel %vm224, 1, 0
    %v241 = vsel %vm225, 1, 0
    %v242 = vsel %vm226, 1, 0
    %v243 = vsel %vm227, 1, 0
    %v244 = vsel %vm228, 1, 0
    %v245 = vsel %vm229, 1, 0
    %v246 = vsel %vm230, 1, 0
    %v247 = vsel %vm231, 1, 0
    %v248 = vsel %vm232, 1, 0
    %v249 = vsel %vm233, 1, 0
    %v250 = vsel %vm234, 1, 0
    %v251 = vsel %vm235, 1, 0
    %v252 = vsel %vm236, 1, 0
    %v253 = vsel %vm237, 1, 0
    %v254 = vsel %vm238, 1, 0
    %v255 = vcvt.s32.f32 %v239
    %v256 = vcvt.s32.f32 %v240
    %v257 = vcvt.s32.f32 %v241
    %v258 = vcvt.s32.f32 %v242
    %v259 = vcvt.s32.f32 %v243
    %v260 = vcvt.s32.f32 %v244
    %v261 = vcvt.s32.f32 %v245
    %v262 = vcvt.s32.f32 %v246
    %v263 = vcvt.s32.f32 %v247
    %v264 = vcvt.s32.f32 %v248
    %v265 = vcvt.s32.f32 %v249
    %v266 = vcvt.s32.f32 %v250
    %v267 = vcvt.s32.f32 %v251
    %v268 = vcvt.s32.f32 %v252
    %v269 = vcvt.s32.f32 %v253
    %v270 = vcvt.s32.f32 %v254
    %271 = vmatpush.xpose.msra.mxu0 0.0
    %272 = vmatpush.xpose.msra.mxu0 0.0
    %273 = vmatpush.xpose.msra.mxu0 0.0
    %274 = vmatpush.xpose.msra.mxu0 0.0
    %275 = vmatpush.xpose.msra.mxu0 0.0
    %276 = vmatpush.xpose.msra.mxu0 0.0
    %277 = vmatpush.xpose.msra.mxu0 0.0
    %278 = vmatpush.xpose.msra.mxu0 0.0
    %279 = vmatpush.xpose.msra.mxu0 0.0
    %280 = vmatpush.xpose.msra.mxu0 0.0
    %281 = vmatpush.xpose.msra.mxu0 0.0
    %282 = vmatpush.xpose.msra.mxu0 0.0
    %283 = vmatpush.xpose.msra.mxu0 %v38
    %284 = vmatpush.xpose.msra.mxu0 %v37
    %285 = vmatpush.xpose.msra.mxu0 %v36
    %286 = vmatpush.xpose.msra.mxu0 %v35
    %287 = vmatmul.f32.gmra.mxu0 %v255
    %v288 = vpop.f32.mrf.mxu0
    %v289 = vadd.f32 0.0, %v288
    %290 = vmatmul.f32.gmra.mxu0 %v256
    %v291 = vpop.f32.mrf.mxu0
    %v292 = vadd.f32 0.0, %v291
    %293 = vmatmul.f32.gmra.mxu0 %v257
    %v294 = vpop.f32.mrf.mxu0
    %v295 = vadd.f32 0.0, %v294
    %296 = vmatmul.f32.gmra.mxu0 %v258
    %v297 = vpop.f32.mrf.mxu0
    %v298 = vadd.f32 0.0, %v297
    %299 = vmatmul.f32.gmra.mxu0 %v259
    %v300 = vpop.f32.mrf.mxu0
    %v301 = vadd.f32 0.0, %v300
    %302 = vmatmul.f32.gmra.mxu0 %v260
    %v303 = vpop.f32.mrf.mxu0
    %v304 = vadd.f32 0.0, %v303
    %305 = vmatmul.f32.gmra.mxu0 %v261
    %v306 = vpop.f32.mrf.mxu0
    %v307 = vadd.f32 0.0, %v306
    %308 = vmatmul.f32.gmra.mxu0 %v262
    %v309 = vpop.f32.mrf.mxu0
    %v310 = vadd.f32 0.0, %v309
    %311 = vmatmul.f32.gmra.mxu0 %v263
    %v312 = vpop.f32.mrf.mxu0
    %v313 = vadd.f32 0.0, %v312
    %314 = vmatmul.f32.gmra.mxu0 %v264
    %v315 = vpop.f32.mrf.mxu0
    %v316 = vadd.f32 0.0, %v315
    %317 = vmatmul.f32.gmra.mxu0 %v265
    %v318 = vpop.f32.mrf.mxu0
    %v319 = vadd.f32 0.0, %v318
    %320 = vmatmul.f32.gmra.mxu0 %v266
    %v321 = vpop.f32.mrf.mxu0
    %v322 = vadd.f32 0.0, %v321
    %323 = vmatmul.f32.gmra.mxu0 %v267
    %v324 = vpop.f32.mrf.mxu0
    %v325 = vadd.f32 0.0, %v324
    %326 = vmatmul.f32.gmra.mxu0 %v268
    %v327 = vpop.f32.mrf.mxu0
    %v328 = vadd.f32 0.0, %v327
    %329 = vmatmul.f32.gmra.mxu0 %v269
    %v330 = vpop.f32.mrf.mxu0
    %v331 = vadd.f32 0.0, %v330
    %332 = vmatmul.f32.gmra.mxu0 %v270
    %v333 = vpop.f32.mrf.mxu0
    %v334 = vadd.f32 0.0, %v333
    %335 = vdwg.mxu0
    %s336 = smul.u32 0, 128
    %v337 = vlaneseq
    %v338 = vshrl.u32 %v337, 7
    %v339 = vadd.s32 %v338, 8
    %v340 = vadd.s32 %v338, 16
    %v341 = vadd.s32 %v338, 24
    %v342 = vadd.s32 %v338, 32
    %v343 = vadd.s32 %v338, 40
    %v344 = vadd.s32 %v338, 48
    %v345 = vadd.s32 %v338, 56
    %v346 = vadd.s32 %v338, 64
    %v347 = vadd.s32 %v338, 72
    %v348 = vadd.s32 %v338, 80
    %v349 = vadd.s32 %v338, 88
    %v350 = vadd.s32 %v338, 96
    %v351 = vadd.s32 %v338, 104
    %v352 = vadd.s32 %v338, 112
    %v353 = vadd.s32 %v338, 120
    %v354 = vstv %s336
    %v355 = vadd.s32 %v354, %v338
    %v356 = vadd.s32 %v354, %v339
    %v357 = vadd.s32 %v354, %v340
    %v358 = vadd.s32 %v354, %v341
    %v359 = vadd.s32 %v354, %v342
    %v360 = vadd.s32 %v354, %v343
    %v361 = vadd.s32 %v354, %v344
    %v362 = vadd.s32 %v354, %v345
    %v363 = vadd.s32 %v354, %v346
    %v364 = vadd.s32 %v354, %v347
    %v365 = vadd.s32 %v354, %v348
    %v366 = vadd.s32 %v354, %v349
    %v367 = vadd.s32 %v354, %v350
    %v368 = vadd.s32 %v354, %v351
    %v369 = vadd.s32 %v354, %v352
    %v370 = vadd.s32 %v354, %v353
    %vm371 = vcmp.lt.s32.totalorder %v355, 16
    %vm372 = vcmp.lt.s32.totalorder %v356, 16
    %vm373 = vcmp.lt.s32.totalorder %v357, 16
    %vm374 = vcmp.lt.s32.totalorder %v358, 16
    %vm375 = vcmp.lt.s32.totalorder %v359, 16
    %vm376 = vcmp.lt.s32.totalorder %v360, 16
    %vm377 = vcmp.lt.s32.totalorder %v361, 16
    %vm378 = vcmp.lt.s32.totalorder %v362, 16
    %vm379 = vcmp.lt.s32.totalorder %v363, 16
    %vm380 = vcmp.lt.s32.totalorder %v364, 16
    %vm381 = vcmp.lt.s32.totalorder %v365, 16
    %vm382 = vcmp.lt.s32.totalorder %v366, 16
    %vm383 = vcmp.lt.s32.totalorder %v367, 16
    %vm384 = vcmp.lt.s32.totalorder %v368, 16
    %vm385 = vcmp.lt.s32.totalorder %v369, 16
    %vm386 = vcmp.lt.s32.totalorder %v370, 16
    %v387 = vsel %vm371, 1, 0
    %v388 = vsel %vm372, 1, 0
    %v389 = vsel %vm373, 1, 0
    %v390 = vsel %vm374, 1, 0
    %v391 = vsel %vm375, 1, 0
    %v392 = vsel %vm376, 1, 0
    %v393 = vsel %vm377, 1, 0
    %v394 = vsel %vm378, 1, 0
    %v395 = vsel %vm379, 1, 0
    %v396 = vsel %vm380, 1, 0
    %v397 = vsel %vm381, 1, 0
    %v398 = vsel %vm382, 1, 0
    %v399 = vsel %vm383, 1, 0
    %v400 = vsel %vm384, 1, 0
    %v401 = vsel %vm385, 1, 0
    %v402 = vsel %vm386, 1, 0
    %v403 = vcvt.s32.f32 %v387
    %v404 = vcvt.s32.f32 %v388
    %v405 = vcvt.s32.f32 %v389
    %v406 = vcvt.s32.f32 %v390
    %v407 = vcvt.s32.f32 %v391
    %v408 = vcvt.s32.f32 %v392
    %v409 = vcvt.s32.f32 %v393
    %v410 = vcvt.s32.f32 %v394
    %v411 = vcvt.s32.f32 %v395
    %v412 = vcvt.s32.f32 %v396
    %v413 = vcvt.s32.f32 %v397
    %v414 = vcvt.s32.f32 %v398
    %v415 = vcvt.s32.f32 %v399
    %v416 = vcvt.s32.f32 %v400
    %v417 = vcvt.s32.f32 %v401
    %v418 = vcvt.s32.f32 %v402
    %v419 = vsub.f32 %v289, %v19
    %v420 = vsub.f32 %v292, %v20
    %v421 = vsub.f32 %v295, %v21
    %v422 = vsub.f32 %v298, %v22
    %v423 = vsub.f32 %v301, %v23
    %v424 = vsub.f32 %v304, %v24
    %v425 = vsub.f32 %v307, %v25
    %v426 = vsub.f32 %v310, %v26
    %v427 = vsub.f32 %v313, %v27
    %v428 = vsub.f32 %v316, %v28
    %v429 = vsub.f32 %v319, %v29
    %v430 = vsub.f32 %v322, %v30
    %v431 = vsub.f32 %v325, %v31
    %v432 = vsub.f32 %v328, %v32
    %v433 = vsub.f32 %v331, %v33
    %v434 = vsub.f32 %v334, %v34
    %v435 = vmul.f32 %v419, %v419
    %v436 = vmul.f32 %v420, %v420
    %v437 = vmul.f32 %v421, %v421
    %v438 = vmul.f32 %v422, %v422
    %v439 = vmul.f32 %v423, %v423
    %v440 = vmul.f32 %v424, %v424
    %v441 = vmul.f32 %v425, %v425
    %v442 = vmul.f32 %v426, %v426
    %v443 = vmul.f32 %v427, %v427
    %v444 = vmul.f32 %v428, %v428
    %v445 = vmul.f32 %v429, %v429
    %v446 = vmul.f32 %v430, %v430
    %v447 = vmul.f32 %v431, %v431
    %v448 = vmul.f32 %v432, %v432
    %v449 = vmul.f32 %v433, %v433
    %v450 = vmul.f32 %v434, %v434
    %v451 = vmul.f32 %v435, %v403
    %v452 = vmul.f32 %v436, %v404
    %v453 = vmul.f32 %v437, %v405
    %v454 = vmul.f32 %v438, %v406
    %v455 = vmul.f32 %v439, %v407
    %v456 = vmul.f32 %v440, %v408
    %v457 = vmul.f32 %v441, %v409
    %v458 = vmul.f32 %v442, %v410
    %v459 = vmul.f32 %v443, %v411
    %v460 = vmul.f32 %v444, %v412
    %v461 = vmul.f32 %v445, %v413
    %v462 = vmul.f32 %v446, %v414
    %v463 = vmul.f32 %v447, %v415
    %v464 = vmul.f32 %v448, %v416
    %v465 = vmul.f32 %v449, %v417
    %v466 = vmul.f32 %v450, %v418
    %v467 = vsel %vm40, %v451, 0.0
    %v468 = vsel %vm40, %v452, 0.0
    %v469 = vadd.f32 %v467, %v468
    %v470 = vsel %vm40, %v453, 0.0
    %v471 = vadd.f32 %v469, %v470
    %v472 = vsel %vm40, %v454, 0.0
    %v473 = vadd.f32 %v471, %v472
    %v474 = vsel %vm40, %v455, 0.0
    %v475 = vadd.f32 %v473, %v474
    %v476 = vsel %vm40, %v456, 0.0
    %v477 = vadd.f32 %v475, %v476
    %v478 = vsel %vm40, %v457, 0.0
    %v479 = vadd.f32 %v477, %v478
    %v480 = vsel %vm40, %v458, 0.0
    %v481 = vadd.f32 %v479, %v480
    %v482 = vsel %vm40, %v459, 0.0
    %v483 = vadd.f32 %v481, %v482
    %v484 = vsel %vm40, %v460, 0.0
    %v485 = vadd.f32 %v483, %v484
    %v486 = vsel %vm40, %v461, 0.0
    %v487 = vadd.f32 %v485, %v486
    %v488 = vsel %vm40, %v462, 0.0
    %v489 = vadd.f32 %v487, %v488
    %v490 = vsel %vm40, %v463, 0.0
    %v491 = vadd.f32 %v489, %v490
    %v492 = vsel %vm40, %v464, 0.0
    %v493 = vadd.f32 %v491, %v492
    %v494 = vsel %vm40, %v465, 0.0
    %v495 = vadd.f32 %v493, %v494
    %v496 = vsel %vm40, %v466, 0.0
    %v497 = vadd.f32 %v495, %v496
    %498 = vadd.xlane.f32.xlu0 %v497
    %v499 = vpop.xlane.xlu0 %498
    %v500 = vrot.slane %v499, 4
    %v501 = vadd.f32 %v499, %v500
    %v502 = vrot.slane %v501, 2
    %v503 = vadd.f32 %v501, %v502
    %v504 = vrot.slane %v503, 1
    %v505 = vadd.f32 %v503, %v504
    %s506 = vtos %v505
    %v507 = vstv %s506
    %508 = vst [vmem:[#allocation4] sm:$0xff] %v507
    %509 = vst.msk [vmem:[%s3] sm:$0xff] %vm40, %v289
    %510 = vst.msk [vmem:[%s3 + $0x8] sm:$0xff] %vm40, %v292
    %511 = vst.msk [vmem:[%s3 + $0x10] sm:$0xff] %vm40, %v295
    %512 = vst.msk [vmem:[%s3 + $0x18] sm:$0xff] %vm40, %v298
    %513 = vst.msk [vmem:[%s3 + $0x20] sm:$0xff] %vm40, %v301
    %514 = vst.msk [vmem:[%s3 + $0x28] sm:$0xff] %vm40, %v304
    %515 = vst.msk [vmem:[%s3 + $0x30] sm:$0xff] %vm40, %v307
    %516 = vst.msk [vmem:[%s3 + $0x38] sm:$0xff] %vm40, %v310
    %517 = vst.msk [vmem:[%s3 + $0x40] sm:$0xff] %vm40, %v313
    %518 = vst.msk [vmem:[%s3 + $0x48] sm:$0xff] %vm40, %v316
    %519 = vst.msk [vmem:[%s3 + $0x50] sm:$0xff] %vm40, %v319
    %520 = vst.msk [vmem:[%s3 + $0x58] sm:$0xff] %vm40, %v322
    %521 = vst.msk [vmem:[%s3 + $0x60] sm:$0xff] %vm40, %v325
    %522 = vst.msk [vmem:[%s3 + $0x68] sm:$0xff] %vm40, %v328
    %523 = vst.msk [vmem:[%s3 + $0x70] sm:$0xff] %vm40, %v331
    %524 = vst.msk [vmem:[%s3 + $0x78] sm:$0xff] %vm40, %v334
    %v525 = vperm.slane %v190, %v222
    %v526 = vadd.s32 %v222, 4294967288
    %v527 = vperm.slane %v192, %v526
    %vm528 = vcmask 130112
    %v529 = vsel %vm528, %v527, %v525
    %v530 = vadd.s32 %v222, 4294967280
    %v531 = vperm.slane %v194, %v530
    %vm532 = vcmask 195712
    %v533 = vsel %vm532, %v531, %v529
    %v534 = vadd.s32 %v222, 4294967272
    %v535 = vperm.slane %v196, %v534
    %vm536 = vcmask 261312
    %v537 = vsel %vm536, %v535, %v533
    %v538 = vadd.s32 %v222, 4294967264
    %v539 = vperm.slane %v198, %v538
    %vm540 = vcmask 326912
    %v541 = vsel %vm540, %v539, %v537
    %v542 = vadd.s32 %v222, 4294967256
    %v543 = vperm.slane %v200, %v542
    %vm544 = vcmask 392512
    %v545 = vsel %vm544, %v543, %v541
    %v546 = vadd.s32 %v222, 4294967248
    %v547 = vperm.slane %v202, %v546
    %vm548 = vcmask 458112
    %v549 = vsel %vm548, %v547, %v545
    %v550 = vadd.s32 %v222, 4294967240
    %v551 = vperm.slane %v204, %v550
    %vm552 = vcmask 523712
    %v553 = vsel %vm552, %v551, %v549
    %v554 = vadd.s32 %v222, 4294967232
    %v555 = vperm.slane %v206, %v554
    %vm556 = vcmask 589312
    %v557 = vsel %vm556, %v555, %v553
    %v558 = vadd.s32 %v222, 4294967224
    %v559 = vperm.slane %v208, %v558
    %vm560 = vcmask 654912
    %v561 = vsel %vm560, %v559, %v557
    %v562 = vadd.s32 %v222, 4294967216
    %v563 = vperm.slane %v210, %v562
    %vm564 = vcmask 720512
    %v565 = vsel %vm564, %v563, %v561
    %v566 = vadd.s32 %v222, 4294967208
    %v567 = vperm.slane %v212, %v566
    %vm568 = vcmask 786112
    %v569 = vsel %vm568, %v567, %v565
    %v570 = vadd.s32 %v222, 4294967200
    %v571 = vperm.slane %v214, %v570
    %vm572 = vcmask 851712
    %v573 = vsel %vm572, %v571, %v569
    %v574 = vadd.s32 %v222, 4294967192
    %v575 = vperm.slane %v216, %v574
    %vm576 = vcmask 917312
    %v577 = vsel %vm576, %v575, %v573
    %v578 = vadd.s32 %v222, 4294967184
    %v579 = vperm.slane %v218, %v578
    %vm580 = vcmask 982912
    %v581 = vsel %vm580, %v579, %v577
    %v582 = vadd.s32 %v222, 4294967176
    %v583 = vperm.slane %v220, %v582
    %vm584 = vcmask 1048512
    %v585 = vsel %vm584, %v583, %v581
    %586 = vst [vmem:[#allocation2] sm:$0x1] %v585
    // Predicated region
    $region14: #{tpu_custom_call.1} parent=1 // pred_check
      _
    $region15: #{tpu_custom_call.1} parent=1 // pred_check_branch
      %588 = sbr.rel (0) target = $region17
    $region16: #{tpu_custom_call.1} parent=1 // pred_region
      _
    $region17: #{tpu_custom_call.1} parent=1 // pred_fallthru
      _
    // Predicated region
    $region18: #{tpu_custom_call.1} parent=1 // pred_check
      _
    $region19: #{tpu_custom_call.1} parent=1 // pred_check_branch
      %590 = sbr.rel (0) target = $region21
    $region20: #{tpu_custom_call.1} parent=1 // pred_region
      %592 = vsyncadd [#allocation3], 0
      %s594 = sshll.u32 [#allocation2], 4
      %s595 = int_to_ptr.vmem [resolvable:$true] %s594
      %s596 = sshll.u32 %s4, 4
      %s597 = int_to_ptr.hbm [resolvable:$true] %s596
      %599 = dma.vmem_to_hbm [thread:$0]  %s595, 16, %s597, [#allocation3]
    $region21: #{tpu_custom_call.1} parent=1 // pred_fallthru
      _
    // Predicated region
    $region22: #{tpu_custom_call.1} parent=1 // pred_check
      _
    $region23: #{tpu_custom_call.1} parent=1 // pred_check_branch
      %601 = sbr.rel (0) target = $region25
    $region24: #{tpu_custom_call.1} parent=1 // pred_region
      %603 = vsyncadd [#allocation5], 0
      %s605 = sshll.u32 [#allocation4], 4
      %s606 = int_to_ptr.vmem [resolvable:$true] %s605
      %s607 = sshll.u32 %s5, 4
      %s608 = int_to_ptr.hbm [resolvable:$true] %s607
      %610 = dma.vmem_to_hbm [thread:$0]  %s606, 128, %s608, [#allocation5]
    $region25: #{tpu_custom_call.1} parent=1 // pred_fallthru
      _
    // Predicated region
    $region26: #{tpu_custom_call.1} parent=1 // pred_check
      _
    $region27: #{tpu_custom_call.1} parent=1 // pred_check_branch
      %612 = sbr.rel (0) target = $region29
    $region28: #{tpu_custom_call.1} parent=1 // pred_region
      _
    $region29: #{tpu_custom_call.1} parent=1 // pred_fallthru
      _
    // Predicated region
    $region30: #{tpu_custom_call.1} parent=1 // pred_check
      _
    $region31: #{tpu_custom_call.1} parent=1 // pred_check_branch
      %614 = sbr.rel (0) target = $region33
    $region32: #{tpu_custom_call.1} parent=1 // pred_region
      %616 = dma.done [#allocation3], 16
    $region33: #{tpu_custom_call.1} parent=1 // pred_fallthru
      _
    // Predicated region
    $region34: #{tpu_custom_call.1} parent=1 // pred_check
      _
    $region35: #{tpu_custom_call.1} parent=1 // pred_check_branch
      %618 = sbr.rel (0) target = $region37
    $region36: #{tpu_custom_call.1} parent=1 // pred_region
      %620 = dma.done [#allocation5], 128
    $region37: #{tpu_custom_call.1} parent=1 // pred_fallthru
      _
    %621 = vsyncpa [#allocation3], 1
    %622 = vsyncpa [#allocation5], 1

</llo_original>
